<compile_context>
chip_gen: v7x
topology: tpu7x:2x2x1
jax: 0.10.0
libtpu: 0.0.40
codegen_flags: <defaults>
</compile_context>

<pallas_src>
import math
import jax
import jax.numpy as jnp
from jax import lax
from jax.experimental import pallas as pl
from jax.experimental.pallas import tpu as pltpu


def _rnn2_kernel(x_ref, h0_ref, wih_t_ref, whh_t_ref, bias_ref, wfc_ref, bfc_ref,
                 y_ref, hn_ref):
    # x_ref    : (S, B, I)  time-major input (I == 1)                 (VMEM)
    # h0_ref   : (B, H)     initial hidden state                      (VMEM)
    # wih_t_ref: (I, H)     W_ih^T (pre-transposed)                   (VMEM)
    # whh_t_ref: (H, H)     W_hh^T (pre-transposed)                   (VMEM)
    # bias_ref : (1, H)     b_ih + b_hh (folded)                      (VMEM)
    # wfc_ref  : (1, H)     W_fc row (output_size == 1)               (VMEM)
    # bfc_ref  : (1, 1)     b_fc in the vector path                   (VMEM)
    # y_ref    : (B, S)     per-step FC output, lane-dense            (VMEM)
    # hn_ref   : (1, B, H)  final hidden state                        (VMEM)
    S, B, I = x_ref.shape

    # ---- Prologue: time-independent input projection, once for the whole
    # sequence.  I == 1 -> pure VPU broadcast-multiply (a K=1 MXU matmul would
    # waste the systolic array).  Held as a value (a few vregs) — no scratch.
    x_all = x_ref[...]                                              # (S, B, I)
    pre_all = x_all[:, :, 0:1] * wih_t_ref[0:1, :] + bias_ref[...]  # (S, B, H)
    for i in range(1, I):      # static; empty for I == 1
        pre_all = pre_all + x_all[:, :, i:i + 1] * wih_t_ref[i:i + 1, :]
    # (If I ever grows past ~4, replace this with one (S*B, I) @ (I, H) matmul.)

    whh_t = whh_t_ref[...]                                          # (H, H)
    wfc = wfc_ref[...]                                              # (1, H)
    bfc = bfc_ref[...]                                              # (1, 1)

    # ---- Serial recurrence with the FC head fused into each step.
    h = h0_ref[...]                                                 # (B, H)
    y_cols = []
    for t in range(S):  # small static S: full unroll, static indices everywhere
        h = jnp.tanh(pre_all[t] +
                     jnp.dot(h, whh_t, preferred_element_type=jnp.float32))
        # Fused FC head: lane reduce over H=16 — free under the MXU->tanh chain.
        y_cols.append(jnp.sum(h * wfc, axis=-1, keepdims=True) + bfc)   # (B, 1)

    hn_ref[...] = h[None]                                 # (1, B, H), one write
    y_ref[...] = jnp.concatenate(y_cols, axis=-1)         # (B, S), one lane-dense store


def rnn2_forward(x, hidden, params):
    """x: (B, S, I) float32, hidden: (1, B, H) float32 -> ((B*S, 1), (1, B, H))."""
    B, S, I = x.shape
    H = params["w_hh"].shape[0]
    O = params["w_fc"].shape[0]
    assert O == 1, "FC head is specialized to output_size == 1 (lane reduction)"

    x_tm = jnp.transpose(x, (1, 0, 2))                       # (S, B, I) time-major
    h0 = hidden[0]                                           # (B, H)
    wih_t = params["w_ih"].T                                 # (I, H)  pre-transposed
    whh_t = params["w_hh"].T                                 # (H, H)  pre-transposed
    bias = (params["b_ih"] + params["b_hh"]).reshape(1, H)   # folded bias
    wfc = params["w_fc"].reshape(1, H)
    bfc = params["b_fc"].reshape(1, 1)                       # vector-path bias

    vmem = pl.BlockSpec(memory_space=pltpu.MemorySpace.VMEM)

    y_bs, hn = pl.pallas_call(
        _rnn2_kernel,
        out_shape=(
            jax.ShapeDtypeStruct((B, S), jnp.float32),       # lane-dense y
            jax.ShapeDtypeStruct((1, B, H), jnp.float32),
        ),
        in_specs=[vmem, vmem, vmem, vmem, vmem, vmem, vmem],
        out_specs=(vmem, vmem),
    )(x_tm, h0, wih_t, whh_t, bias, wfc, bfc)

    # (B, S) row-major flatten == PyTorch batch_first r_out.view(-1, H) @ fc ordering.
    output = y_bs.reshape(B * S, 1)
    return output, hn


def init_params(key, input_size=1, hidden_size=16, output_size=1):
    """Deterministic init mimicking PyTorch's U(-1/sqrt(H), 1/sqrt(H))."""
    k = jax.random.split(key, 6)
    bound = 1.0 / math.sqrt(hidden_size)
    u = lambda kk, shape: jax.random.uniform(kk, shape, jnp.float32, -bound, bound)
    return {
        "w_ih": u(k[0], (hidden_size, input_size)),
        "w_hh": u(k[1], (hidden_size, hidden_size)),
        "b_ih": u(k[2], (hidden_size,)),
        "b_hh": u(k[3], (hidden_size,)),
        "w_fc": u(k[4], (output_size, hidden_size)),
        "b_fc": u(k[5], (output_size,)),
    }


def _reference(x, hidden, params):
    """Pure-JAX reference (lax.scan) with identical semantics."""
    B, S, I = x.shape
    H = params["w_hh"].shape[0]

    def step(h, x_t):
        h_new = jnp.tanh(x_t @ params["w_ih"].T + params["b_ih"]
                         + h @ params["w_hh"].T + params["b_hh"])
        return h_new, h_new

    h_last, hs = lax.scan(step, hidden[0], jnp.transpose(x, (1, 0, 2)))
    r_out = jnp.transpose(hs, (1, 0, 2)).reshape(-1, H)
    out = r_out @ params["w_fc"].T + params["b_fc"]
    return out, h_last[None]


if __name__ == "__main__":
    key = jax.random.PRNGKey(0)
    kx, kh, kp = jax.random.split(key, 3)

    B, S, I, H, O = 2, 8, 1, 16, 1
    x = jax.random.normal(kx, (B, S, I), jnp.float32)
    hidden = jax.random.normal(kh, (1, B, H), jnp.float32)
    params = init_params(kp, input_size=I, hidden_size=H, output_size=O)

    out, hn = jax.jit(rnn2_forward)(x, hidden, params)
    jax.block_until_ready((out, hn))

    ref_out, ref_hn = _reference(x, hidden, params)
    assert out.shape == (B * S, O) and hn.shape == (1, B, H)
    assert jnp.allclose(out, ref_out, atol=1e-5), "output mismatch"
    assert jnp.allclose(hn, ref_hn, atol=1e-5), "hidden mismatch"

    print("KERNEL_OK")
</pallas_src>

<mosaic_0001>
module attributes {stable_mosaic.version = 11 : i64} {
  func.func @_rnn2_kernel(%arg0: memref<8x2x1xf32, #tpu.memory_space<vmem>>, %arg1: memref<2x16xf32, #tpu.memory_space<vmem>>, %arg2: memref<1x16xf32, #tpu.memory_space<vmem>>, %arg3: memref<16x16xf32, #tpu.memory_space<vmem>>, %arg4: memref<1x16xf32, #tpu.memory_space<vmem>>, %arg5: memref<1x16xf32, #tpu.memory_space<vmem>>, %arg6: memref<1x1xf32, #tpu.memory_space<vmem>>, %arg7: memref<2x8xf32, #tpu.memory_space<vmem>>, %arg8: memref<1x2x16xf32, #tpu.memory_space<vmem>>) attributes {dimension_semantics = [], scalar_prefetch = 0 : i64, scratch_operands = 0 : i64, tpu.core_type = #tpu.core_type<tc>} {
    %c0 = arith.constant 0 : index
    %c0_0 = arith.constant 0 : index
    %c0_1 = arith.constant 0 : index
    %0 = vector.load %arg0[%c0, %c0_0, %c0_1] : memref<8x2x1xf32, #tpu.memory_space<vmem>>, vector<8x2x1xf32>
    %c0_2 = arith.constant 0 : index
    %c0_3 = arith.constant 0 : index
    %1 = vector.load %arg2[%c0_2, %c0_3] : memref<1x16xf32, #tpu.memory_space<vmem>>, vector<1x16xf32>
    %2 = vector.shape_cast %1 : vector<1x16xf32> to vector<1x1x16xf32>
    %3 = vector.broadcast %0 : vector<8x2x1xf32> to vector<8x2x16xf32>
    %4 = vector.broadcast %2 : vector<1x1x16xf32> to vector<8x2x16xf32>
    %5 = arith.mulf %3, %4 : vector<8x2x16xf32>
    %c0_4 = arith.constant 0 : index
    %c0_5 = arith.constant 0 : index
    %6 = vector.load %arg4[%c0_4, %c0_5] : memref<1x16xf32, #tpu.memory_space<vmem>>, vector<1x16xf32>
    %7 = vector.shape_cast %6 : vector<1x16xf32> to vector<1x1x16xf32>
    %8 = vector.broadcast %7 : vector<1x1x16xf32> to vector<8x2x16xf32>
    %9 = arith.addf %5, %8 : vector<8x2x16xf32>
    %c0_6 = arith.constant 0 : index
    %c0_7 = arith.constant 0 : index
    %10 = vector.load %arg3[%c0_6, %c0_7] : memref<16x16xf32, #tpu.memory_space<vmem>>, vector<16x16xf32>
    %c0_8 = arith.constant 0 : index
    %c0_9 = arith.constant 0 : index
    %11 = vector.load %arg5[%c0_8, %c0_9] : memref<1x16xf32, #tpu.memory_space<vmem>>, vector<1x16xf32>
    %c0_10 = arith.constant 0 : index
    %c0_11 = arith.constant 0 : index
    %12 = vector.load %arg6[%c0_10, %c0_11] : memref<1x1xf32, #tpu.memory_space<vmem>>, vector<1x1xf32>
    %c0_12 = arith.constant 0 : index
    %c0_13 = arith.constant 0 : index
    %13 = vector.load %arg1[%c0_12, %c0_13] : memref<2x16xf32, #tpu.memory_space<vmem>>, vector<2x16xf32>
    %14 = vector.extract_strided_slice %9 {offsets = [0, 0, 0], sizes = [1, 2, 16], strides = [1, 1, 1]} : vector<8x2x16xf32> to vector<1x2x16xf32>
    %15 = vector.shape_cast %14 : vector<1x2x16xf32> to vector<2x16xf32>
    %cst = arith.constant dense<0.000000e+00> : vector<2x16xf32>
    %16 = tpu.matmul %13, %10, %cst {dimension_numbers = #tpu.dot_dimension_numbers<[1], [0], [0], [1], [0, 0, 1, 1], [], []>} : vector<2x16xf32>, vector<16x16xf32>, vector<2x16xf32> -> vector<2x16xf32>
    %17 = arith.addf %15, %16 : vector<2x16xf32>
    %18 = math.tanh %17 : vector<2x16xf32>
    %19 = vector.broadcast %11 : vector<1x16xf32> to vector<2x16xf32>
    %20 = arith.mulf %18, %19 : vector<2x16xf32>
    %cst_14 = arith.constant dense<0.000000e+00> : vector<2xf32>
    %21 = vector.multi_reduction <add>, %20, %cst_14 [1] : vector<2x16xf32> to vector<2xf32>
    %22 = vector.shape_cast %21 : vector<2xf32> to vector<2x1xf32>
    %23 = vector.broadcast %12 : vector<1x1xf32> to vector<2x1xf32>
    %24 = arith.addf %22, %23 : vector<2x1xf32>
    %25 = vector.extract_strided_slice %9 {offsets = [1, 0, 0], sizes = [1, 2, 16], strides = [1, 1, 1]} : vector<8x2x16xf32> to vector<1x2x16xf32>
    %26 = vector.shape_cast %25 : vector<1x2x16xf32> to vector<2x16xf32>
    %cst_15 = arith.constant dense<0.000000e+00> : vector<2x16xf32>
    %27 = tpu.matmul %18, %10, %cst_15 {dimension_numbers = #tpu.dot_dimension_numbers<[1], [0], [0], [1], [0, 0, 1, 1], [], []>} : vector<2x16xf32>, vector<16x16xf32>, vector<2x16xf32> -> vector<2x16xf32>
    %28 = arith.addf %26, %27 : vector<2x16xf32>
    %29 = math.tanh %28 : vector<2x16xf32>
    %30 = vector.broadcast %11 : vector<1x16xf32> to vector<2x16xf32>
    %31 = arith.mulf %29, %30 : vector<2x16xf32>
    %cst_16 = arith.constant dense<0.000000e+00> : vector<2xf32>
    %32 = vector.multi_reduction <add>, %31, %cst_16 [1] : vector<2x16xf32> to vector<2xf32>
    %33 = vector.shape_cast %32 : vector<2xf32> to vector<2x1xf32>
    %34 = vector.broadcast %12 : vector<1x1xf32> to vector<2x1xf32>
    %35 = arith.addf %33, %34 : vector<2x1xf32>
    %36 = vector.extract_strided_slice %9 {offsets = [2, 0, 0], sizes = [1, 2, 16], strides = [1, 1, 1]} : vector<8x2x16xf32> to vector<1x2x16xf32>
    %37 = vector.shape_cast %36 : vector<1x2x16xf32> to vector<2x16xf32>
    %cst_17 = arith.constant dense<0.000000e+00> : vector<2x16xf32>
    %38 = tpu.matmul %29, %10, %cst_17 {dimension_numbers = #tpu.dot_dimension_numbers<[1], [0], [0], [1], [0, 0, 1, 1], [], []>} : vector<2x16xf32>, vector<16x16xf32>, vector<2x16xf32> -> vector<2x16xf32>
    %39 = arith.addf %37, %38 : vector<2x16xf32>
    %40 = math.tanh %39 : vector<2x16xf32>
    %41 = vector.broadcast %11 : vector<1x16xf32> to vector<2x16xf32>
    %42 = arith.mulf %40, %41 : vector<2x16xf32>
    %cst_18 = arith.constant dense<0.000000e+00> : vector<2xf32>
    %43 = vector.multi_reduction <add>, %42, %cst_18 [1] : vector<2x16xf32> to vector<2xf32>
    %44 = vector.shape_cast %43 : vector<2xf32> to vector<2x1xf32>
    %45 = vector.broadcast %12 : vector<1x1xf32> to vector<2x1xf32>
    %46 = arith.addf %44, %45 : vector<2x1xf32>
    %47 = vector.extract_strided_slice %9 {offsets = [3, 0, 0], sizes = [1, 2, 16], strides = [1, 1, 1]} : vector<8x2x16xf32> to vector<1x2x16xf32>
    %48 = vector.shape_cast %47 : vector<1x2x16xf32> to vector<2x16xf32>
    %cst_19 = arith.constant dense<0.000000e+00> : vector<2x16xf32>
    %49 = tpu.matmul %40, %10, %cst_19 {dimension_numbers = #tpu.dot_dimension_numbers<[1], [0], [0], [1], [0, 0, 1, 1], [], []>} : vector<2x16xf32>, vector<16x16xf32>, vector<2x16xf32> -> vector<2x16xf32>
    %50 = arith.addf %48, %49 : vector<2x16xf32>
    %51 = math.tanh %50 : vector<2x16xf32>
    %52 = vector.broadcast %11 : vector<1x16xf32> to vector<2x16xf32>
    %53 = arith.mulf %51, %52 : vector<2x16xf32>
    %cst_20 = arith.constant dense<0.000000e+00> : vector<2xf32>
    %54 = vector.multi_reduction <add>, %53, %cst_20 [1] : vector<2x16xf32> to vector<2xf32>
    %55 = vector.shape_cast %54 : vector<2xf32> to vector<2x1xf32>
    %56 = vector.broadcast %12 : vector<1x1xf32> to vector<2x1xf32>
    %57 = arith.addf %55, %56 : vector<2x1xf32>
    %58 = vector.extract_strided_slice %9 {offsets = [4, 0, 0], sizes = [1, 2, 16], strides = [1, 1, 1]} : vector<8x2x16xf32> to vector<1x2x16xf32>
    %59 = vector.shape_cast %58 : vector<1x2x16xf32> to vector<2x16xf32>
    %cst_21 = arith.constant dense<0.000000e+00> : vector<2x16xf32>
    %60 = tpu.matmul %51, %10, %cst_21 {dimension_numbers = #tpu.dot_dimension_numbers<[1], [0], [0], [1], [0, 0, 1, 1], [], []>} : vector<2x16xf32>, vector<16x16xf32>, vector<2x16xf32> -> vector<2x16xf32>
    %61 = arith.addf %59, %60 : vector<2x16xf32>
    %62 = math.tanh %61 : vector<2x16xf32>
    %63 = vector.broadcast %11 : vector<1x16xf32> to vector<2x16xf32>
    %64 = arith.mulf %62, %63 : vector<2x16xf32>
    %cst_22 = arith.constant dense<0.000000e+00> : vector<2xf32>
    %65 = vector.multi_reduction <add>, %64, %cst_22 [1] : vector<2x16xf32> to vector<2xf32>
    %66 = vector.shape_cast %65 : vector<2xf32> to vector<2x1xf32>
    %67 = vector.broadcast %12 : vector<1x1xf32> to vector<2x1xf32>
    %68 = arith.addf %66, %67 : vector<2x1xf32>
    %69 = vector.extract_strided_slice %9 {offsets = [5, 0, 0], sizes = [1, 2, 16], strides = [1, 1, 1]} : vector<8x2x16xf32> to vector<1x2x16xf32>
    %70 = vector.shape_cast %69 : vector<1x2x16xf32> to vector<2x16xf32>
    %cst_23 = arith.constant dense<0.000000e+00> : vector<2x16xf32>
    %71 = tpu.matmul %62, %10, %cst_23 {dimension_numbers = #tpu.dot_dimension_numbers<[1], [0], [0], [1], [0, 0, 1, 1], [], []>} : vector<2x16xf32>, vector<16x16xf32>, vector<2x16xf32> -> vector<2x16xf32>
    %72 = arith.addf %70, %71 : vector<2x16xf32>
    %73 = math.tanh %72 : vector<2x16xf32>
    %74 = vector.broadcast %11 : vector<1x16xf32> to vector<2x16xf32>
    %75 = arith.mulf %73, %74 : vector<2x16xf32>
    %cst_24 = arith.constant dense<0.000000e+00> : vector<2xf32>
    %76 = vector.multi_reduction <add>, %75, %cst_24 [1] : vector<2x16xf32> to vector<2xf32>
    %77 = vector.shape_cast %76 : vector<2xf32> to vector<2x1xf32>
    %78 = vector.broadcast %12 : vector<1x1xf32> to vector<2x1xf32>
    %79 = arith.addf %77, %78 : vector<2x1xf32>
    %80 = vector.extract_strided_slice %9 {offsets = [6, 0, 0], sizes = [1, 2, 16], strides = [1, 1, 1]} : vector<8x2x16xf32> to vector<1x2x16xf32>
    %81 = vector.shape_cast %80 : vector<1x2x16xf32> to vector<2x16xf32>
    %cst_25 = arith.constant dense<0.000000e+00> : vector<2x16xf32>
    %82 = tpu.matmul %73, %10, %cst_25 {dimension_numbers = #tpu.dot_dimension_numbers<[1], [0], [0], [1], [0, 0, 1, 1], [], []>} : vector<2x16xf32>, vector<16x16xf32>, vector<2x16xf32> -> vector<2x16xf32>
    %83 = arith.addf %81, %82 : vector<2x16xf32>
    %84 = math.tanh %83 : vector<2x16xf32>
    %85 = vector.broadcast %11 : vector<1x16xf32> to vector<2x16xf32>
    %86 = arith.mulf %84, %85 : vector<2x16xf32>
    %cst_26 = arith.constant dense<0.000000e+00> : vector<2xf32>
    %87 = vector.multi_reduction <add>, %86, %cst_26 [1] : vector<2x16xf32> to vector<2xf32>
    %88 = vector.shape_cast %87 : vector<2xf32> to vector<2x1xf32>
    %89 = vector.broadcast %12 : vector<1x1xf32> to vector<2x1xf32>
    %90 = arith.addf %88, %89 : vector<2x1xf32>
    %91 = vector.extract_strided_slice %9 {offsets = [7, 0, 0], sizes = [1, 2, 16], strides = [1, 1, 1]} : vector<8x2x16xf32> to vector<1x2x16xf32>
    %92 = vector.shape_cast %91 : vector<1x2x16xf32> to vector<2x16xf32>
    %cst_27 = arith.constant dense<0.000000e+00> : vector<2x16xf32>
    %93 = tpu.matmul %84, %10, %cst_27 {dimension_numbers = #tpu.dot_dimension_numbers<[1], [0], [0], [1], [0, 0, 1, 1], [], []>} : vector<2x16xf32>, vector<16x16xf32>, vector<2x16xf32> -> vector<2x16xf32>
    %94 = arith.addf %92, %93 : vector<2x16xf32>
    %95 = math.tanh %94 : vector<2x16xf32>
    %96 = vector.broadcast %11 : vector<1x16xf32> to vector<2x16xf32>
    %97 = arith.mulf %95, %96 : vector<2x16xf32>
    %cst_28 = arith.constant dense<0.000000e+00> : vector<2xf32>
    %98 = vector.multi_reduction <add>, %97, %cst_28 [1] : vector<2x16xf32> to vector<2xf32>
    %99 = vector.shape_cast %98 : vector<2xf32> to vector<2x1xf32>
    %100 = vector.broadcast %12 : vector<1x1xf32> to vector<2x1xf32>
    %101 = arith.addf %99, %100 : vector<2x1xf32>
    %102 = vector.shape_cast %95 : vector<2x16xf32> to vector<1x2x16xf32>
    %c0_29 = arith.constant 0 : index
    %c0_30 = arith.constant 0 : index
    %c0_31 = arith.constant 0 : index
    %103 = vector.load %arg8[%c0_29, %c0_30, %c0_31] : memref<1x2x16xf32, #tpu.memory_space<vmem>>, vector<1x2x16xf32>
    tpu.vector_store %arg8[%c0_29, %c0_30, %c0_31], %102 {strides = array<i32>} : memref<1x2x16xf32, #tpu.memory_space<vmem>>, vector<1x2x16xf32>,
    %104 = tpu.concatenate %24, %35, %46, %57, %68, %79, %90, %101 in 1 : vector<2x1xf32>, vector<2x1xf32>, vector<2x1xf32>, vector<2x1xf32>, vector<2x1xf32>, vector<2x1xf32>, vector<2x1xf32>, vector<2x1xf32> -> vector<2x8xf32>
    %c0_32 = arith.constant 0 : index
    %c0_33 = arith.constant 0 : index
    %105 = vector.load %arg7[%c0_32, %c0_33] : memref<2x8xf32, #tpu.memory_space<vmem>>, vector<2x8xf32>
    tpu.vector_store %arg7[%c0_32, %c0_33], %104 {strides = array<i32>} : memref<2x8xf32, #tpu.memory_space<vmem>>, vector<2x8xf32>,
    return
  }
}

</mosaic_0001>

<llo_original>
// kernel: rnn2_forward.1
$region0: #{rnn2_forward.1}
  #allocation0 [shape = 'u32[]', space=smem, size = 0x4, offset = 0x4, fixed_abs, tag = 'smem constant byte address 0x4 - core index']
  #allocation1 [shape = 'u32[144,128]{1,0:T(1,128)}', space=vmem, size = 0x12000, scoped, tag = 'internal scratch']
  #allocation2 [shape = 'f32[1,1]{1,0:T(1,128)S(1)}', space=vmem, size = 0x200, scoped, tag = 'scoped memory for rnn2_forward.1']
  %s0 = inlined_call_operand.vmem [shape: f32[8,2,1], index: 0, kind: input, shape index: {}]
  %s1 = inlined_call_operand.vmem [shape: f32[2,16], index: 1, kind: input, shape index: {}]
  %s2 = inlined_call_operand.vmem [shape: f32[1,16], index: 2, kind: input, shape index: {}]
  %s3 = inlined_call_operand.vmem [shape: f32[16,16], index: 3, kind: input, shape index: {}]
  %s4 = inlined_call_operand.vmem [shape: f32[1,16], index: 4, kind: input, shape index: {}]
  %s5 = inlined_call_operand.vmem [shape: f32[1,16], index: 5, kind: input, shape index: {}]
  %s6 = inlined_call_operand.<no memory space> [shape: f32[1,1], index: 6, kind: input, shape index: {}]
  %s7 = inlined_call_operand.vmem [shape: f32[2,8], index: 7, kind: output, shape index: {0}]
  %s8 = inlined_call_operand.hbm [shape: f32[1,2,16], index: 8, kind: output, shape index: {1}]
  %9 = xla_tuple %s7, %s8
  %s10 = sld [smem:[#allocation0]]
  $region46: #{rnn2_forward.1} parent=0
    _
  %s12 = ssub.s32 1, %s10
  %s13 = scalar_select 0, %s12, %s10
  %v14 = vstv %s6
  %15 = vst [vmem:[#allocation2] sm:$0x1] %v14
  $region1: #{rnn2_forward.1} parent=0
    #allocation3 [shape = 'u8[1024]{0}', space=vmem, size = 0x400, scoped, tag = 'output window, operand 1, single buffered']
    #allocation4 [shape = 's32[1]{0}', space=sflag, size = 0x4, scoped, tag = 'scoped memory for rnn2_forward.1']
    %16 = vsyncpa [#allocation4], 0
    // Predicated region
    $region2: #{rnn2_forward.1} parent=1 // pred_check
      _
    $region3: #{rnn2_forward.1} parent=1 // pred_check_branch
      %18 = sbr.rel (0) target = $region5
    $region4: #{rnn2_forward.1} parent=1 // pred_region
      _
    $region5: #{rnn2_forward.1} parent=1 // pred_fallthru
      _
    // Predicated region
    $region6: #{rnn2_forward.1} parent=1 // pred_check
      _
    $region7: #{rnn2_forward.1} parent=1 // pred_check_branch
      %20 = sbr.rel (0) target = $region9
    $region8: #{rnn2_forward.1} parent=1 // pred_region
      _
    $region9: #{rnn2_forward.1} parent=1 // pred_fallthru
      _
    // Predicated region
    $region10: #{rnn2_forward.1} parent=1 // pred_check
      _
    $region11: #{rnn2_forward.1} parent=1 // pred_check_branch
      %22 = sbr.rel (0) target = $region13
    $region12: #{rnn2_forward.1} parent=1 // pred_region
      _
    $region13: #{rnn2_forward.1} parent=1 // pred_fallthru
      _
    // Predicated region
    $region14: #{rnn2_forward.1} parent=1 // pred_check
      _
    $region15: #{rnn2_forward.1} parent=1 // pred_check_branch
      %24 = sbr.rel (0) target = $region17
    $region16: #{rnn2_forward.1} parent=1 // pred_region
      _
    $region17: #{rnn2_forward.1} parent=1 // pred_fallthru
      _
    // Predicated region
    $region18: #{rnn2_forward.1} parent=1 // pred_check
      _
    $region19: #{rnn2_forward.1} parent=1 // pred_check_branch
      %26 = sbr.rel (0) target = $region21
    $region20: #{rnn2_forward.1} parent=1 // pred_region
      _
    $region21: #{rnn2_forward.1} parent=1 // pred_fallthru
      _
    // Predicated region
    $region22: #{rnn2_forward.1} parent=1 // pred_check
      _
    $region23: #{rnn2_forward.1} parent=1 // pred_check_branch
      %28 = sbr.rel (0) target = $region25
    $region24: #{rnn2_forward.1} parent=1 // pred_region
      _
    $region25: #{rnn2_forward.1} parent=1 // pred_fallthru
      _
    // Predicated region
    $region26: #{rnn2_forward.1} parent=1 // pred_check
      _
    $region27: #{rnn2_forward.1} parent=1 // pred_check_branch
      %30 = sbr.rel (0) target = $region29
    $region28: #{rnn2_forward.1} parent=1 // pred_region
      _
    $region29: #{rnn2_forward.1} parent=1 // pred_fallthru
      _
    %v31 = vld [vmem:[%s0] sm:$0x3]
    %v32 = vld [vmem:[%s0 + $0x2] sm:$0x3]
    %v33 = vld [vmem:[%s0 + $0x4] sm:$0x3]
    %v34 = vld [vmem:[%s0 + $0x6] sm:$0x3]
    %v35 = vld [vmem:[%s0 + $0x8] sm:$0x3]
    %v36 = vld [vmem:[%s0 + $0xa] sm:$0x3]
    %v37 = vld [vmem:[%s0 + $0xc] sm:$0x3]
    %v38 = vld [vmem:[%s0 + $0xe] sm:$0x3]
    %v39 = vld [vmem:[%s2] sm:$0x1]
    %41 = vset.pattern.permute.xlu0 0
    %42 = vperm.xlu0 %41, %v31
    %v43 = vpop.permute.xlu0 %42
    %46 = vset.pattern.permute.xlu0 0
    %47 = vperm.xlu0 %46, %v32
    %v48 = vpop.permute.xlu0 %47
    %51 = vset.pattern.permute.xlu0 0
    %52 = vperm.xlu0 %51, %v33
    %v53 = vpop.permute.xlu0 %52
    %56 = vset.pattern.permute.xlu0 0
    %57 = vperm.xlu0 %56, %v34
    %v58 = vpop.permute.xlu0 %57
    %61 = vset.pattern.permute.xlu0 0
    %62 = vperm.xlu0 %61, %v35
    %v63 = vpop.permute.xlu0 %62
    %66 = vset.pattern.permute.xlu0 0
    %67 = vperm.xlu0 %66, %v36
    %v68 = vpop.permute.xlu0 %67
    %71 = vset.pattern.permute.xlu0 0
    %72 = vperm.xlu0 %71, %v37
    %v73 = vpop.permute.xlu0 %72
    %76 = vset.pattern.permute.xlu0 0
    %77 = vperm.xlu0 %76, %v38
    %v78 = vpop.permute.xlu0 %77
    %v81 = vlaneseq
    %v82 = vshrl.u32 %v81, 7
    %v83 = vsub.s32 0, %v82
    %v84 = vrot.slane %v39, %v83
    %v86 = vmul.f32 %v43, %v84
    %v87 = vmul.f32 %v48, %v84
    %v88 = vmul.f32 %v53, %v84
    %v89 = vmul.f32 %v58, %v84
    %v90 = vmul.f32 %v63, %v84
    %v91 = vmul.f32 %v68, %v84
    %v92 = vmul.f32 %v73, %v84
    %v93 = vmul.f32 %v78, %v84
    %v94 = vld [vmem:[%s4] sm:$0x1]
    %v96 = vlaneseq
    %v97 = vshrl.u32 %v96, 7
    %v98 = vsub.s32 0, %v97
    %v99 = vrot.slane %v94, %v98
    %v101 = vadd.f32 %v86, %v99
    %v102 = vadd.f32 %v87, %v99
    %v103 = vadd.f32 %v88, %v99
    %v104 = vadd.f32 %v89, %v99
    %v105 = vadd.f32 %v90, %v99
    %v106 = vadd.f32 %v91, %v99
    %v107 = vadd.f32 %v92, %v99
    %v108 = vadd.f32 %v93, %v99
    %v109 = vld [vmem:[%s3] sm:$0xff]
    %v110 = vld [vmem:[%s3 + $0x8] sm:$0xff]
    %v111 = vld [vmem:[%s5] sm:$0x1]
    %v112 = vld [vmem:[#allocation2] sm:$0x1]
    %v113 = vld [vmem:[%s1] sm:$0x3]
    %vm114 = vcmask 130048
    %v116 = vsel %vm114, %v113, 0
    %118 = vmatprep.subr.mxu0 0.0
    %119 = vmatpush1.msra.mxu0 %v109
    %120 = vmatprep.subr.mxu0 0.0
    %121 = vmatpush1.msra.mxu0 %v110
    %122 = vmatprep.subr.mxu0 0.0
    %123 = vmatpush1.msra.mxu0 0.0
    %124 = vmatprep.subr.mxu0 0.0
    %125 = vmatpush1.msra.mxu0 0.0
    %126 = vmatprep.subr.mxu0 0.0
    %127 = vmatpush1.msra.mxu0 0.0
    %128 = vmatprep.subr.mxu0 0.0
    %129 = vmatpush1.msra.mxu0 0.0
    %130 = vmatprep.subr.mxu0 0.0
    %131 = vmatpush1.msra.mxu0 0.0
    %132 = vmatprep.subr.mxu0 0.0
    %133 = vmatpush1.msra.mxu0 0.0
    %134 = vmatprep.subr.mxu0 0.0
    %135 = vmatpush1.msra.mxu0 0.0
    %136 = vmatprep.subr.mxu0 0.0
    %137 = vmatpush1.msra.mxu0 0.0
    %138 = vmatprep.subr.mxu0 0.0
    %139 = vmatpush1.msra.mxu0 0.0
    %140 = vmatprep.subr.mxu0 0.0
    %141 = vmatpush1.msra.mxu0 0.0
    %142 = vmatprep.subr.mxu0 0.0
    %143 = vmatpush1.msra.mxu0 0.0
    %144 = vmatprep.subr.mxu0 0.0
    %145 = vmatpush1.msra.mxu0 0.0
    %146 = vmatprep.subr.mxu0 0.0
    %147 = vmatpush1.msra.mxu0 0.0
    %148 = vmatprep.subr.mxu0 0.0
    %149 = vmatpush1.msra.mxu0 0.0
    %150 = vmatprep.subr.mxu0 0.0
    %151 = vmatpush1.msra.mxu0 0.0
    %152 = vmatprep.subr.mxu0 0.0
    %153 = vmatpush1.msra.mxu0 0.0
    %154 = vmatprep.subr.mxu0 0.0
    %155 = vmatpush1.msra.mxu0 0.0
    %156 = vmatprep.subr.mxu0 0.0
    %157 = vmatpush1.msra.mxu0 0.0
    %158 = vmatprep.subr.mxu0 0.0
    %159 = vmatpush1.msra.mxu0 0.0
    %160 = vmatprep.subr.mxu0 0.0
    %161 = vmatpush1.msra.mxu0 0.0
    %162 = vmatprep.subr.mxu0 0.0
    %163 = vmatpush1.msra.mxu0 0.0
    %164 = vmatprep.subr.mxu0 0.0
    %165 = vmatpush1.msra.mxu0 0.0
    %166 = vmatprep.subr.mxu0 0.0
    %167 = vmatpush1.msra.mxu0 0.0
    %168 = vmatprep.subr.mxu0 0.0
    %169 = vmatpush1.msra.mxu0 0.0
    %170 = vmatprep.subr.mxu0 0.0
    %171 = vmatpush1.msra.mxu0 0.0
    %172 = vmatprep.subr.mxu0 0.0
    %173 = vmatpush1.msra.mxu0 0.0
    %174 = vmatprep.subr.mxu0 0.0
    %175 = vmatpush1.msra.mxu0 0.0
    %176 = vmatprep.subr.mxu0 0.0
    %177 = vmatpush1.msra.mxu0 0.0
    %178 = vmatprep.subr.mxu0 0.0
    %179 = vmatpush1.msra.mxu0 0.0
    %180 = vmatprep.subr.mxu0 0.0
    %181 = vmatpush1.msra.mxu0 0.0
    %182 = vmatprep.mubr.f32.mxu0 0.0
    %183 = vmatmul.mubr.f32.gmra.mrb[0].mxu0 %v116
    %v184 = vpop.f32.mrb[0].mxu0
    %v185 = vadd.f32 0.0, %v184
    %v186 = vpop.f32.mrb[0].mxu0
    %187 = vdwg.mxu0
    %v188 = vadd.f32 %v101, %v185
    %v189 = vtanh.pop %v188
    %v191 = vlaneseq
    %v192 = vshrl.u32 %v191, 7
    %v193 = vsub.s32 0, %v192
    %v194 = vrot.slane %v111, %v193
    %v196 = vmul.f32 %v189, %v194
    %vm197 = vcmask 123904
    %v198 = vsel %vm197, %v196, 0.0
    %199 = vadd.xlane.f32.xlu0 %v198
    %v200 = vpop.xlane.xlu0 %199
    %v202 = vlaneseq
    %v203 = vshrl.u32 %v202, 7
    %v204 = vsub.s32 0, %v203
    %v205 = vrot.slane %v112, %v204
    %v207 = vadd.f32 %v200, %v205
    %v209 = vsel %vm114, %v189, 0
    %211 = vmatprep.subr.mxu0 0.0
    %212 = vmatpush1.msra.mxu0 %v109
    %213 = vmatprep.subr.mxu0 0.0
    %214 = vmatpush1.msra.mxu0 %v110
    %215 = vmatprep.subr.mxu0 0.0
    %216 = vmatpush1.msra.mxu0 0.0
    %217 = vmatprep.subr.mxu0 0.0
    %218 = vmatpush1.msra.mxu0 0.0
    %219 = vmatprep.subr.mxu0 0.0
    %220 = vmatpush1.msra.mxu0 0.0
    %221 = vmatprep.subr.mxu0 0.0
    %222 = vmatpush1.msra.mxu0 0.0
    %223 = vmatprep.subr.mxu0 0.0
    %224 = vmatpush1.msra.mxu0 0.0
    %225 = vmatprep.subr.mxu0 0.0
    %226 = vmatpush1.msra.mxu0 0.0
    %227 = vmatprep.subr.mxu0 0.0
    %228 = vmatpush1.msra.mxu0 0.0
    %229 = vmatprep.subr.mxu0 0.0
    %230 = vmatpush1.msra.mxu0 0.0
    %231 = vmatprep.subr.mxu0 0.0
    %232 = vmatpush1.msra.mxu0 0.0
    %233 = vmatprep.subr.mxu0 0.0
    %234 = vmatpush1.msra.mxu0 0.0
    %235 = vmatprep.subr.mxu0 0.0
    %236 = vmatpush1.msra.mxu0 0.0
    %237 = vmatprep.subr.mxu0 0.0
    %238 = vmatpush1.msra.mxu0 0.0
    %239 = vmatprep.subr.mxu0 0.0
    %240 = vmatpush1.msra.mxu0 0.0
    %241 = vmatprep.subr.mxu0 0.0
    %242 = vmatpush1.msra.mxu0 0.0
    %243 = vmatprep.subr.mxu0 0.0
    %244 = vmatpush1.msra.mxu0 0.0
    %245 = vmatprep.subr.mxu0 0.0
    %246 = vmatpush1.msra.mxu0 0.0
    %247 = vmatprep.subr.mxu0 0.0
    %248 = vmatpush1.msra.mxu0 0.0
    %249 = vmatprep.subr.mxu0 0.0
    %250 = vmatpush1.msra.mxu0 0.0
    %251 = vmatprep.subr.mxu0 0.0
    %252 = vmatpush1.msra.mxu0 0.0
    %253 = vmatprep.subr.mxu0 0.0
    %254 = vmatpush1.msra.mxu0 0.0
    %255 = vmatprep.subr.mxu0 0.0
    %256 = vmatpush1.msra.mxu0 0.0
    %257 = vmatprep.subr.mxu0 0.0
    %258 = vmatpush1.msra.mxu0 0.0
    %259 = vmatprep.subr.mxu0 0.0
    %260 = vmatpush1.msra.mxu0 0.0
    %261 = vmatprep.subr.mxu0 0.0
    %262 = vmatpush1.msra.mxu0 0.0
    %263 = vmatprep.subr.mxu0 0.0
    %264 = vmatpush1.msra.mxu0 0.0
    %265 = vmatprep.subr.mxu0 0.0
    %266 = vmatpush1.msra.mxu0 0.0
    %267 = vmatprep.subr.mxu0 0.0
    %268 = vmatpush1.msra.mxu0 0.0
    %269 = vmatprep.subr.mxu0 0.0
    %270 = vmatpush1.msra.mxu0 0.0
    %271 = vmatprep.subr.mxu0 0.0
    %272 = vmatpush1.msra.mxu0 0.0
    %273 = vmatprep.subr.mxu0 0.0
    %274 = vmatpush1.msra.mxu0 0.0
    %275 = vmatprep.mubr.f32.mxu0 0.0
    %276 = vmatmul.mubr.f32.gmra.mrb[0].mxu0 %v209
    %v277 = vpop.f32.mrb[0].mxu0
    %v278 = vadd.f32 0.0, %v277
    %v279 = vpop.f32.mrb[0].mxu0
    %280 = vdwg.mxu0
    %v281 = vadd.f32 %v102, %v278
    %v282 = vtanh.pop %v281
    %v283 = vmul.f32 %v282, %v194
    %v284 = vsel %vm197, %v283, 0.0
    %285 = vadd.xlane.f32.xlu0 %v284
    %v286 = vpop.xlane.xlu0 %285
    %v287 = vadd.f32 %v286, %v205
    %v289 = vsel %vm114, %v282, 0
    %291 = vmatprep.subr.mxu0 0.0
    %292 = vmatpush1.msra.mxu0 %v109
    %293 = vmatprep.subr.mxu0 0.0
    %294 = vmatpush1.msra.mxu0 %v110
    %295 = vmatprep.subr.mxu0 0.0
    %296 = vmatpush1.msra.mxu0 0.0
    %297 = vmatprep.subr.mxu0 0.0
    %298 = vmatpush1.msra.mxu0 0.0
    %299 = vmatprep.subr.mxu0 0.0
    %300 = vmatpush1.msra.mxu0 0.0
    %301 = vmatprep.subr.mxu0 0.0
    %302 = vmatpush1.msra.mxu0 0.0
    %303 = vmatprep.subr.mxu0 0.0
    %304 = vmatpush1.msra.mxu0 0.0
    %305 = vmatprep.subr.mxu0 0.0
    %306 = vmatpush1.msra.mxu0 0.0
    %307 = vmatprep.subr.mxu0 0.0
    %308 = vmatpush1.msra.mxu0 0.0
    %309 = vmatprep.subr.mxu0 0.0
    %310 = vmatpush1.msra.mxu0 0.0
    %311 = vmatprep.subr.mxu0 0.0
    %312 = vmatpush1.msra.mxu0 0.0
    %313 = vmatprep.subr.mxu0 0.0
    %314 = vmatpush1.msra.mxu0 0.0
    %315 = vmatprep.subr.mxu0 0.0
    %316 = vmatpush1.msra.mxu0 0.0
    %317 = vmatprep.subr.mxu0 0.0
    %318 = vmatpush1.msra.mxu0 0.0
    %319 = vmatprep.subr.mxu0 0.0
    %320 = vmatpush1.msra.mxu0 0.0
    %321 = vmatprep.subr.mxu0 0.0
    %322 = vmatpush1.msra.mxu0 0.0
    %323 = vmatprep.subr.mxu0 0.0
    %324 = vmatpush1.msra.mxu0 0.0
    %325 = vmatprep.subr.mxu0 0.0
    %326 = vmatpush1.msra.mxu0 0.0
    %327 = vmatprep.subr.mxu0 0.0
    %328 = vmatpush1.msra.mxu0 0.0
    %329 = vmatprep.subr.mxu0 0.0
    %330 = vmatpush1.msra.mxu0 0.0
    %331 = vmatprep.subr.mxu0 0.0
    %332 = vmatpush1.msra.mxu0 0.0
    %333 = vmatprep.subr.mxu0 0.0
    %334 = vmatpush1.msra.mxu0 0.0
    %335 = vmatprep.subr.mxu0 0.0
    %336 = vmatpush1.msra.mxu0 0.0
    %337 = vmatprep.subr.mxu0 0.0
    %338 = vmatpush1.msra.mxu0 0.0
    %339 = vmatprep.subr.mxu0 0.0
    %340 = vmatpush1.msra.mxu0 0.0
    %341 = vmatprep.subr.mxu0 0.0
    %342 = vmatpush1.msra.mxu0 0.0
    %343 = vmatprep.subr.mxu0 0.0
    %344 = vmatpush1.msra.mxu0 0.0
    %345 = vmatprep.subr.mxu0 0.0
    %346 = vmatpush1.msra.mxu0 0.0
    %347 = vmatprep.subr.mxu0 0.0
    %348 = vmatpush1.msra.mxu0 0.0
    %349 = vmatprep.subr.mxu0 0.0
    %350 = vmatpush1.msra.mxu0 0.0
    %351 = vmatprep.subr.mxu0 0.0
    %352 = vmatpush1.msra.mxu0 0.0
    %353 = vmatprep.subr.mxu0 0.0
    %354 = vmatpush1.msra.mxu0 0.0
    %355 = vmatprep.mubr.f32.mxu0 0.0
    %356 = vmatmul.mubr.f32.gmra.mrb[0].mxu0 %v289
    %v357 = vpop.f32.mrb[0].mxu0
    %v358 = vadd.f32 0.0, %v357
    %v359 = vpop.f32.mrb[0].mxu0
    %360 = vdwg.mxu0
    %v361 = vadd.f32 %v103, %v358
    %v362 = vtanh.pop %v361
    %v363 = vmul.f32 %v362, %v194
    %v364 = vsel %vm197, %v363, 0.0
    %365 = vadd.xlane.f32.xlu0 %v364
    %v366 = vpop.xlane.xlu0 %365
    %v367 = vadd.f32 %v366, %v205
    %v369 = vsel %vm114, %v362, 0
    %371 = vmatprep.subr.mxu0 0.0
    %372 = vmatpush1.msra.mxu0 %v109
    %373 = vmatprep.subr.mxu0 0.0
    %374 = vmatpush1.msra.mxu0 %v110
    %375 = vmatprep.subr.mxu0 0.0
    %376 = vmatpush1.msra.mxu0 0.0
    %377 = vmatprep.subr.mxu0 0.0
    %378 = vmatpush1.msra.mxu0 0.0
    %379 = vmatprep.subr.mxu0 0.0
    %380 = vmatpush1.msra.mxu0 0.0
    %381 = vmatprep.subr.mxu0 0.0
    %382 = vmatpush1.msra.mxu0 0.0
    %383 = vmatprep.subr.mxu0 0.0
    %384 = vmatpush1.msra.mxu0 0.0
    %385 = vmatprep.subr.mxu0 0.0
    %386 = vmatpush1.msra.mxu0 0.0
    %387 = vmatprep.subr.mxu0 0.0
    %388 = vmatpush1.msra.mxu0 0.0
    %389 = vmatprep.subr.mxu0 0.0
    %390 = vmatpush1.msra.mxu0 0.0
    %391 = vmatprep.subr.mxu0 0.0
    %392 = vmatpush1.msra.mxu0 0.0
    %393 = vmatprep.subr.mxu0 0.0
    %394 = vmatpush1.msra.mxu0 0.0
    %395 = vmatprep.subr.mxu0 0.0
    %396 = vmatpush1.msra.mxu0 0.0
    %397 = vmatprep.subr.mxu0 0.0
    %398 = vmatpush1.msra.mxu0 0.0
    %399 = vmatprep.subr.mxu0 0.0
    %400 = vmatpush1.msra.mxu0 0.0
    %401 = vmatprep.subr.mxu0 0.0
    %402 = vmatpush1.msra.mxu0 0.0
    %403 = vmatprep.subr.mxu0 0.0
    %404 = vmatpush1.msra.mxu0 0.0
    %405 = vmatprep.subr.mxu0 0.0
    %406 = vmatpush1.msra.mxu0 0.0
    %407 = vmatprep.subr.mxu0 0.0
    %408 = vmatpush1.msra.mxu0 0.0
    %409 = vmatprep.subr.mxu0 0.0
    %410 = vmatpush1.msra.mxu0 0.0
    %411 = vmatprep.subr.mxu0 0.0
    %412 = vmatpush1.msra.mxu0 0.0
    %413 = vmatprep.subr.mxu0 0.0
    %414 = vmatpush1.msra.mxu0 0.0
    %415 = vmatprep.subr.mxu0 0.0
    %416 = vmatpush1.msra.mxu0 0.0
    %417 = vmatprep.subr.mxu0 0.0
    %418 = vmatpush1.msra.mxu0 0.0
    %419 = vmatprep.subr.mxu0 0.0
    %420 = vmatpush1.msra.mxu0 0.0
    %421 = vmatprep.subr.mxu0 0.0
    %422 = vmatpush1.msra.mxu0 0.0
    %423 = vmatprep.subr.mxu0 0.0
    %424 = vmatpush1.msra.mxu0 0.0
    %425 = vmatprep.subr.mxu0 0.0
    %426 = vmatpush1.msra.mxu0 0.0
    %427 = vmatprep.subr.mxu0 0.0
    %428 = vmatpush1.msra.mxu0 0.0
    %429 = vmatprep.subr.mxu0 0.0
    %430 = vmatpush1.msra.mxu0 0.0
    %431 = vmatprep.subr.mxu0 0.0
    %432 = vmatpush1.msra.mxu0 0.0
    %433 = vmatprep.subr.mxu0 0.0
    %434 = vmatpush1.msra.mxu0 0.0
    %435 = vmatprep.mubr.f32.mxu0 0.0
    %436 = vmatmul.mubr.f32.gmra.mrb[0].mxu0 %v369
    %v437 = vpop.f32.mrb[0].mxu0
    %v438 = vadd.f32 0.0, %v437
    %v439 = vpop.f32.mrb[0].mxu0
    %440 = vdwg.mxu0
    %v441 = vadd.f32 %v104, %v438
    %v442 = vtanh.pop %v441
    %v443 = vmul.f32 %v442, %v194
    %v444 = vsel %vm197, %v443, 0.0
    %445 = vadd.xlane.f32.xlu0 %v444
    %v446 = vpop.xlane.xlu0 %445
    %v447 = vadd.f32 %v446, %v205
    %v449 = vsel %vm114, %v442, 0
    %451 = vmatprep.subr.mxu0 0.0
    %452 = vmatpush1.msra.mxu0 %v109
    %453 = vmatprep.subr.mxu0 0.0
    %454 = vmatpush1.msra.mxu0 %v110
    %455 = vmatprep.subr.mxu0 0.0
    %456 = vmatpush1.msra.mxu0 0.0
    %457 = vmatprep.subr.mxu0 0.0
    %458 = vmatpush1.msra.mxu0 0.0
    %459 = vmatprep.subr.mxu0 0.0
    %460 = vmatpush1.msra.mxu0 0.0
    %461 = vmatprep.subr.mxu0 0.0
    %462 = vmatpush1.msra.mxu0 0.0
    %463 = vmatprep.subr.mxu0 0.0
    %464 = vmatpush1.msra.mxu0 0.0
    %465 = vmatprep.subr.mxu0 0.0
    %466 = vmatpush1.msra.mxu0 0.0
    %467 = vmatprep.subr.mxu0 0.0
    %468 = vmatpush1.msra.mxu0 0.0
    %469 = vmatprep.subr.mxu0 0.0
    %470 = vmatpush1.msra.mxu0 0.0
    %471 = vmatprep.subr.mxu0 0.0
    %472 = vmatpush1.msra.mxu0 0.0
    %473 = vmatprep.subr.mxu0 0.0
    %474 = vmatpush1.msra.mxu0 0.0
    %475 = vmatprep.subr.mxu0 0.0
    %476 = vmatpush1.msra.mxu0 0.0
    %477 = vmatprep.subr.mxu0 0.0
    %478 = vmatpush1.msra.mxu0 0.0
    %479 = vmatprep.subr.mxu0 0.0
    %480 = vmatpush1.msra.mxu0 0.0
    %481 = vmatprep.subr.mxu0 0.0
    %482 = vmatpush1.msra.mxu0 0.0
    %483 = vmatprep.subr.mxu0 0.0
    %484 = vmatpush1.msra.mxu0 0.0
    %485 = vmatprep.subr.mxu0 0.0
    %486 = vmatpush1.msra.mxu0 0.0
    %487 = vmatprep.subr.mxu0 0.0
    %488 = vmatpush1.msra.mxu0 0.0
    %489 = vmatprep.subr.mxu0 0.0
    %490 = vmatpush1.msra.mxu0 0.0
    %491 = vmatprep.subr.mxu0 0.0
    %492 = vmatpush1.msra.mxu0 0.0
    %493 = vmatprep.subr.mxu0 0.0
    %494 = vmatpush1.msra.mxu0 0.0
    %495 = vmatprep.subr.mxu0 0.0
    %496 = vmatpush1.msra.mxu0 0.0
    %497 = vmatprep.subr.mxu0 0.0
    %498 = vmatpush1.msra.mxu0 0.0
    %499 = vmatprep.subr.mxu0 0.0
    %500 = vmatpush1.msra.mxu0 0.0
    %501 = vmatprep.subr.mxu0 0.0
    %502 = vmatpush1.msra.mxu0 0.0
    %503 = vmatprep.subr.mxu0 0.0
    %504 = vmatpush1.msra.mxu0 0.0
    %505 = vmatprep.subr.mxu0 0.0
    %506 = vmatpush1.msra.mxu0 0.0
    %507 = vmatprep.subr.mxu0 0.0
    %508 = vmatpush1.msra.mxu0 0.0
    %509 = vmatprep.subr.mxu0 0.0
    %510 = vmatpush1.msra.mxu0 0.0
    %511 = vmatprep.subr.mxu0 0.0
    %512 = vmatpush1.msra.mxu0 0.0
    %513 = vmatprep.subr.mxu0 0.0
    %514 = vmatpush1.msra.mxu0 0.0
    %515 = vmatprep.mubr.f32.mxu0 0.0
    %516 = vmatmul.mubr.f32.gmra.mrb[0].mxu0 %v449
    %v517 = vpop.f32.mrb[0].mxu0
    %v518 = vadd.f32 0.0, %v517
    %v519 = vpop.f32.mrb[0].mxu0
    %520 = vdwg.mxu0
    %v521 = vadd.f32 %v105, %v518
    %v522 = vtanh.pop %v521
    %v523 = vmul.f32 %v522, %v194
    %v524 = vsel %vm197, %v523, 0.0
    %525 = vadd.xlane.f32.xlu0 %v524
    %v526 = vpop.xlane.xlu0 %525
    %v527 = vadd.f32 %v526, %v205
    %v529 = vsel %vm114, %v522, 0
    %531 = vmatprep.subr.mxu0 0.0
    %532 = vmatpush1.msra.mxu0 %v109
    %533 = vmatprep.subr.mxu0 0.0
    %534 = vmatpush1.msra.mxu0 %v110
    %535 = vmatprep.subr.mxu0 0.0
    %536 = vmatpush1.msra.mxu0 0.0
    %537 = vmatprep.subr.mxu0 0.0
    %538 = vmatpush1.msra.mxu0 0.0
    %539 = vmatprep.subr.mxu0 0.0
    %540 = vmatpush1.msra.mxu0 0.0
    %541 = vmatprep.subr.mxu0 0.0
    %542 = vmatpush1.msra.mxu0 0.0
    %543 = vmatprep.subr.mxu0 0.0
    %544 = vmatpush1.msra.mxu0 0.0
    %545 = vmatprep.subr.mxu0 0.0
    %546 = vmatpush1.msra.mxu0 0.0
    %547 = vmatprep.subr.mxu0 0.0
    %548 = vmatpush1.msra.mxu0 0.0
    %549 = vmatprep.subr.mxu0 0.0
    %550 = vmatpush1.msra.mxu0 0.0
    %551 = vmatprep.subr.mxu0 0.0
    %552 = vmatpush1.msra.mxu0 0.0
    %553 = vmatprep.subr.mxu0 0.0
    %554 = vmatpush1.msra.mxu0 0.0
    %555 = vmatprep.subr.mxu0 0.0
    %556 = vmatpush1.msra.mxu0 0.0
    %557 = vmatprep.subr.mxu0 0.0
    %558 = vmatpush1.msra.mxu0 0.0
    %559 = vmatprep.subr.mxu0 0.0
    %560 = vmatpush1.msra.mxu0 0.0
    %561 = vmatprep.subr.mxu0 0.0
    %562 = vmatpush1.msra.mxu0 0.0
    %563 = vmatprep.subr.mxu0 0.0
    %564 = vmatpush1.msra.mxu0 0.0
    %565 = vmatprep.subr.mxu0 0.0
    %566 = vmatpush1.msra.mxu0 0.0
    %567 = vmatprep.subr.mxu0 0.0
    %568 = vmatpush1.msra.mxu0 0.0
    %569 = vmatprep.subr.mxu0 0.0
    %570 = vmatpush1.msra.mxu0 0.0
    %571 = vmatprep.subr.mxu0 0.0
    %572 = vmatpush1.msra.mxu0 0.0
    %573 = vmatprep.subr.mxu0 0.0
    %574 = vmatpush1.msra.mxu0 0.0
    %575 = vmatprep.subr.mxu0 0.0
    %576 = vmatpush1.msra.mxu0 0.0
    %577 = vmatprep.subr.mxu0 0.0
    %578 = vmatpush1.msra.mxu0 0.0
    %579 = vmatprep.subr.mxu0 0.0
    %580 = vmatpush1.msra.mxu0 0.0
    %581 = vmatprep.subr.mxu0 0.0
    %582 = vmatpush1.msra.mxu0 0.0
    %583 = vmatprep.subr.mxu0 0.0
    %584 = vmatpush1.msra.mxu0 0.0
    %585 = vmatprep.subr.mxu0 0.0
    %586 = vmatpush1.msra.mxu0 0.0
    %587 = vmatprep.subr.mxu0 0.0
    %588 = vmatpush1.msra.mxu0 0.0
    %589 = vmatprep.subr.mxu0 0.0
    %590 = vmatpush1.msra.mxu0 0.0
    %591 = vmatprep.subr.mxu0 0.0
    %592 = vmatpush1.msra.mxu0 0.0
    %593 = vmatprep.subr.mxu0 0.0
    %594 = vmatpush1.msra.mxu0 0.0
    %595 = vmatprep.mubr.f32.mxu0 0.0
    %596 = vmatmul.mubr.f32.gmra.mrb[0].mxu0 %v529
    %v597 = vpop.f32.mrb[0].mxu0
    %v598 = vadd.f32 0.0, %v597
    %v599 = vpop.f32.mrb[0].mxu0
    %600 = vdwg.mxu0
    %v601 = vadd.f32 %v106, %v598
    %v602 = vtanh.pop %v601
    %v603 = vmul.f32 %v602, %v194
    %v604 = vsel %vm197, %v603, 0.0
    %605 = vadd.xlane.f32.xlu0 %v604
    %v606 = vpop.xlane.xlu0 %605
    %v607 = vadd.f32 %v606, %v205
    %v609 = vsel %vm114, %v602, 0
    %611 = vmatprep.subr.mxu0 0.0
    %612 = vmatpush1.msra.mxu0 %v109
    %613 = vmatprep.subr.mxu0 0.0
    %614 = vmatpush1.msra.mxu0 %v110
    %615 = vmatprep.subr.mxu0 0.0
    %616 = vmatpush1.msra.mxu0 0.0
    %617 = vmatprep.subr.mxu0 0.0
    %618 = vmatpush1.msra.mxu0 0.0
    %619 = vmatprep.subr.mxu0 0.0
    %620 = vmatpush1.msra.mxu0 0.0
    %621 = vmatprep.subr.mxu0 0.0
    %622 = vmatpush1.msra.mxu0 0.0
    %623 = vmatprep.subr.mxu0 0.0
    %624 = vmatpush1.msra.mxu0 0.0
    %625 = vmatprep.subr.mxu0 0.0
    %626 = vmatpush1.msra.mxu0 0.0
    %627 = vmatprep.subr.mxu0 0.0
    %628 = vmatpush1.msra.mxu0 0.0
    %629 = vmatprep.subr.mxu0 0.0
    %630 = vmatpush1.msra.mxu0 0.0
    %631 = vmatprep.subr.mxu0 0.0
    %632 = vmatpush1.msra.mxu0 0.0
    %633 = vmatprep.subr.mxu0 0.0
    %634 = vmatpush1.msra.mxu0 0.0
    %635 = vmatprep.subr.mxu0 0.0
    %636 = vmatpush1.msra.mxu0 0.0
    %637 = vmatprep.subr.mxu0 0.0
    %638 = vmatpush1.msra.mxu0 0.0
    %639 = vmatprep.subr.mxu0 0.0
    %640 = vmatpush1.msra.mxu0 0.0
    %641 = vmatprep.subr.mxu0 0.0
    %642 = vmatpush1.msra.mxu0 0.0
    %643 = vmatprep.subr.mxu0 0.0
    %644 = vmatpush1.msra.mxu0 0.0
    %645 = vmatprep.subr.mxu0 0.0
    %646 = vmatpush1.msra.mxu0 0.0
    %647 = vmatprep.subr.mxu0 0.0
    %648 = vmatpush1.msra.mxu0 0.0
    %649 = vmatprep.subr.mxu0 0.0
    %650 = vmatpush1.msra.mxu0 0.0
    %651 = vmatprep.subr.mxu0 0.0
    %652 = vmatpush1.msra.mxu0 0.0
    %653 = vmatprep.subr.mxu0 0.0
    %654 = vmatpush1.msra.mxu0 0.0
    %655 = vmatprep.subr.mxu0 0.0
    %656 = vmatpush1.msra.mxu0 0.0
    %657 = vmatprep.subr.mxu0 0.0
    %658 = vmatpush1.msra.mxu0 0.0
    %659 = vmatprep.subr.mxu0 0.0
    %660 = vmatpush1.msra.mxu0 0.0
    %661 = vmatprep.subr.mxu0 0.0
    %662 = vmatpush1.msra.mxu0 0.0
    %663 = vmatprep.subr.mxu0 0.0
    %664 = vmatpush1.msra.mxu0 0.0
    %665 = vmatprep.subr.mxu0 0.0
    %666 = vmatpush1.msra.mxu0 0.0
    %667 = vmatprep.subr.mxu0 0.0
    %668 = vmatpush1.msra.mxu0 0.0
    %669 = vmatprep.subr.mxu0 0.0
    %670 = vmatpush1.msra.mxu0 0.0
    %671 = vmatprep.subr.mxu0 0.0
    %672 = vmatpush1.msra.mxu0 0.0
    %673 = vmatprep.subr.mxu0 0.0
    %674 = vmatpush1.msra.mxu0 0.0
    %675 = vmatprep.mubr.f32.mxu0 0.0
    %676 = vmatmul.mubr.f32.gmra.mrb[0].mxu0 %v609
    %v677 = vpop.f32.mrb[0].mxu0
    %v678 = vadd.f32 0.0, %v677
    %v679 = vpop.f32.mrb[0].mxu0
    %680 = vdwg.mxu0
    %v681 = vadd.f32 %v107, %v678
    %v682 = vtanh.pop %v681
    %v683 = vmul.f32 %v682, %v194
    %v684 = vsel %vm197, %v683, 0.0
    %685 = vadd.xlane.f32.xlu0 %v684
    %v686 = vpop.xlane.xlu0 %685
    %v687 = vadd.f32 %v686, %v205
    %v689 = vsel %vm114, %v682, 0
    %691 = vmatprep.subr.mxu0 0.0
    %692 = vmatpush1.msra.mxu0 %v109
    %693 = vmatprep.subr.mxu0 0.0
    %694 = vmatpush1.msra.mxu0 %v110
    %695 = vmatprep.subr.mxu0 0.0
    %696 = vmatpush1.msra.mxu0 0.0
    %697 = vmatprep.subr.mxu0 0.0
    %698 = vmatpush1.msra.mxu0 0.0
    %699 = vmatprep.subr.mxu0 0.0
    %700 = vmatpush1.msra.mxu0 0.0
    %701 = vmatprep.subr.mxu0 0.0
    %702 = vmatpush1.msra.mxu0 0.0
    %703 = vmatprep.subr.mxu0 0.0
    %704 = vmatpush1.msra.mxu0 0.0
    %705 = vmatprep.subr.mxu0 0.0
    %706 = vmatpush1.msra.mxu0 0.0
    %707 = vmatprep.subr.mxu0 0.0
    %708 = vmatpush1.msra.mxu0 0.0
    %709 = vmatprep.subr.mxu0 0.0
    %710 = vmatpush1.msra.mxu0 0.0
    %711 = vmatprep.subr.mxu0 0.0
    %712 = vmatpush1.msra.mxu0 0.0
    %713 = vmatprep.subr.mxu0 0.0
    %714 = vmatpush1.msra.mxu0 0.0
    %715 = vmatprep.subr.mxu0 0.0
    %716 = vmatpush1.msra.mxu0 0.0
    %717 = vmatprep.subr.mxu0 0.0
    %718 = vmatpush1.msra.mxu0 0.0
    %719 = vmatprep.subr.mxu0 0.0
    %720 = vmatpush1.msra.mxu0 0.0
    %721 = vmatprep.subr.mxu0 0.0
    %722 = vmatpush1.msra.mxu0 0.0
    %723 = vmatprep.subr.mxu0 0.0
    %724 = vmatpush1.msra.mxu0 0.0
    %725 = vmatprep.subr.mxu0 0.0
    %726 = vmatpush1.msra.mxu0 0.0
    %727 = vmatprep.subr.mxu0 0.0
    %728 = vmatpush1.msra.mxu0 0.0
    %729 = vmatprep.subr.mxu0 0.0
    %730 = vmatpush1.msra.mxu0 0.0
    %731 = vmatprep.subr.mxu0 0.0
    %732 = vmatpush1.msra.mxu0 0.0
    %733 = vmatprep.subr.mxu0 0.0
    %734 = vmatpush1.msra.mxu0 0.0
    %735 = vmatprep.subr.mxu0 0.0
    %736 = vmatpush1.msra.mxu0 0.0
    %737 = vmatprep.subr.mxu0 0.0
    %738 = vmatpush1.msra.mxu0 0.0
    %739 = vmatprep.subr.mxu0 0.0
    %740 = vmatpush1.msra.mxu0 0.0
    %741 = vmatprep.subr.mxu0 0.0
    %742 = vmatpush1.msra.mxu0 0.0
    %743 = vmatprep.subr.mxu0 0.0
    %744 = vmatpush1.msra.mxu0 0.0
    %745 = vmatprep.subr.mxu0 0.0
    %746 = vmatpush1.msra.mxu0 0.0
    %747 = vmatprep.subr.mxu0 0.0
    %748 = vmatpush1.msra.mxu0 0.0
    %749 = vmatprep.subr.mxu0 0.0
    %750 = vmatpush1.msra.mxu0 0.0
    %751 = vmatprep.subr.mxu0 0.0
    %752 = vmatpush1.msra.mxu0 0.0
    %753 = vmatprep.subr.mxu0 0.0
    %754 = vmatpush1.msra.mxu0 0.0
    %755 = vmatprep.mubr.f32.mxu0 0.0
    %756 = vmatmul.mubr.f32.gmra.mrb[0].mxu0 %v689
    %v757 = vpop.f32.mrb[0].mxu0
    %v758 = vadd.f32 0.0, %v757
    %v759 = vpop.f32.mrb[0].mxu0
    %760 = vdwg.mxu0
    %v761 = vadd.f32 %v108, %v758
    %v762 = vtanh.pop %v761
    %v763 = vmul.f32 %v762, %v194
    %v764 = vsel %vm197, %v763, 0.0
    %765 = vadd.xlane.f32.xlu0 %v764
    %v766 = vpop.xlane.xlu0 %765
    %v767 = vadd.f32 %v766, %v205
    %768 = vst.msk [vmem:[#allocation3] sm:$0x3] %vm197, %v762
    %770 = vrot.lane.b32.xlu0 %v287, 1
    %v771 = vpop.permute.xlu0 %770
    %774 = vrot.lane.b32.xlu0 %v367, 2
    %v775 = vpop.permute.xlu0 %774
    %778 = vrot.lane.b32.xlu0 %v447, 3
    %v779 = vpop.permute.xlu0 %778
    %782 = vrot.lane.b32.xlu0 %v527, 4
    %v783 = vpop.permute.xlu0 %782
    %786 = vrot.lane.b32.xlu0 %v607, 5
    %v787 = vpop.permute.xlu0 %786
    %790 = vrot.lane.b32.xlu0 %v687, 6
    %v791 = vpop.permute.xlu0 %790
    %794 = vrot.lane.b32.xlu0 %v767, 7
    %v795 = vpop.permute.xlu0 %794
    %vm797 = vcmask 7168
    %v798 = vsel %vm797, %v207, %v771
    %vm799 = vcmask 15360
    %v800 = vsel %vm799, %v798, %v775
    %vm801 = vcmask 23552
    %v802 = vsel %vm801, %v800, %v779
    %vm803 = vcmask 31744
    %v804 = vsel %vm803, %v802, %v783
    %vm805 = vcmask 39936
    %v806 = vsel %vm805, %v804, %v787
    %vm807 = vcmask 48128
    %v808 = vsel %vm807, %v806, %v791
    %vm809 = vcmask 56320
    %v810 = vsel %vm809, %v808, %v795
    %vm811 = vcmask 58368
    %812 = vst.msk [vmem:[%s7] sm:$0x3] %vm811, %v810
    // Predicated region
    $region30: #{rnn2_forward.1} parent=1 // pred_check
      _
    $region31: #{rnn2_forward.1} parent=1 // pred_check_branch
      %814 = sbr.rel (0) target = $region33
    $region32: #{rnn2_forward.1} parent=1 // pred_region
      _
    $region33: #{rnn2_forward.1} parent=1 // pred_fallthru
      _
    // Predicated region
    $region34: #{rnn2_forward.1} parent=1 // pred_check
      _
    $region35: #{rnn2_forward.1} parent=1 // pred_check_branch
      %816 = sbr.rel (0) target = $region37
    $region36: #{rnn2_forward.1} parent=1 // pred_region
      %s818 = ssub.s32 32, 32
      %819 = vsyncadd [#allocation4], %s818
      %s821 = sshll.u32 [#allocation3], 4
      %s822 = int_to_ptr.vmem [resolvable:$true] %s821
      %824 = dma.vmem_to_hbm [thread:$0]  %s822, 32, %s8, [#allocation4]
    $region37: #{rnn2_forward.1} parent=1 // pred_fallthru
      _
    // Predicated region
    $region38: #{rnn2_forward.1} parent=1 // pred_check
      _
    $region39: #{rnn2_forward.1} parent=1 // pred_check_branch
      %826 = sbr.rel (0) target = $region41
    $region40: #{rnn2_forward.1} parent=1 // pred_region
      _
    $region41: #{rnn2_forward.1} parent=1 // pred_fallthru
      _
    // Predicated region
    $region42: #{rnn2_forward.1} parent=1 // pred_check
      _
    $region43: #{rnn2_forward.1} parent=1 // pred_check_branch
      %828 = sbr.rel (0) target = $region45
    $region44: #{rnn2_forward.1} parent=1 // pred_region
      %829 = dma.done [#allocation4], 32
    $region45: #{rnn2_forward.1} parent=1 // pred_fallthru
      _
    %830 = vsyncpa [#allocation4], 1

</llo_original>
